<compile_context>
chip_gen: v6e
topology: v6e:2x2x1
jax: 0.10.0
libtpu: 0.0.40
codegen_flags: <defaults>
</compile_context>

<pallas_src>
import math

import jax
import jax.numpy as jnp
from jax.experimental import pallas as pl
from jax.experimental.pallas import tpu as pltpu


def _round_up(x: int, m: int) -> int:
    return ((x + m - 1) // m) * m


def _pick_tile(dim: int, cap: int, align: int) -> int:
    """Largest tile (multiple of `align`, <= cap) that minimizes edge padding."""
    padded = _round_up(max(dim, 1), align)
    if padded <= cap:
        return padded
    n_tiles = -(-padded // cap)
    return _round_up(-(-padded // n_tiles), align)


def _choose_tiles(M: int, K: int, N: int, compute_dtype) -> tuple[int, int, int]:
    # Caps sized so double-buffered x/w tiles + resident f32 output tile stay
    # ~10-12 MiB: inside the default scoped VMEM on v5e (16 MiB), v6e (32 MiB)
    # and v7x (32 MiB scoped / 64 MiB physical per TensorCore).
    tm_cap = 512
    tn_cap = 1024
    tk_cap = 1024 if jnp.dtype(compute_dtype).itemsize <= 2 else 512
    tm = _pick_tile(M, tm_cap, 8)
    tn = _pick_tile(N, tn_cap, 128)
    tk = _pick_tile(K, tk_cap, 128)
    # v7x megacore: if the whole problem would otherwise be a single (i, j)
    # output tile, split tn so both TensorCores get a "parallel" block.
    if _round_up(M, 8) <= tm and _round_up(N, 128) <= tn and tn >= 256:
        tn = _round_up(tn // 2, 128)
    return tm, tn, tk


def _linear_sq_kernel(x_ref, w_ref, b_ref, o_ref):
    """One (tm, tn) output tile; grid axis 2 walks K with the tile resident."""
    k = pl.program_id(2)

    @pl.when(k == 0)
    def _init():
        # Fold the bias add into the accumulator init. o_ref (f32) stays
        # resident across the K axis (its index_map ignores k), so we
        # accumulate straight into it: no scratch, no finalize copy.
        o_ref[...] = jnp.broadcast_to(b_ref[...], o_ref.shape)

    # Operands were squared / cast in the wrapper; this is a pure MXU tile.
    o_ref[...] += jnp.dot(x_ref[...], w_ref[...],
                          preferred_element_type=jnp.float32)


def prepare_weight_sq(weight, bias, *, tk: int, tn: int, compute_dtype):
    """One-time weight/bias prep (hoist out of the hot path or let jit
    constant-fold it for static weights): square in f32, transpose to (K, N),
    zero-pad to tile multiples (exact: 0**2 = 0), then cast for the MXU."""
    N, K = weight.shape
    K_pad = _round_up(K, tk)
    N_pad = _round_up(N, tn)
    w_sq_t = jnp.pad((weight.astype(jnp.float32) ** 2).T,
                     ((0, K_pad - K), (0, N_pad - N))).astype(compute_dtype)
    if bias is None:
        b_row = jnp.zeros((1, N_pad), jnp.float32)
    else:
        b_row = jnp.pad(bias.astype(jnp.float32), (0, N_pad - N)).reshape(1, N_pad)
    return w_sq_t, b_row


def linear_sq_sample(x, weight, bias, *, compute_dtype=jnp.bfloat16):
    """x: (M, K), weight: (N, K), bias: (N,) or None -> (M, N) float32.

    compute_dtype is the MXU operand dtype. bf16 (default) gives v6e/v7x MXU
    peak and half the HBM operand traffic; accumulation is always f32. Pass
    jnp.float32 for bit-tight numerics.
    """
    M, K = x.shape
    N, K2 = weight.shape
    assert K == K2
    if bias is not None:
        assert bias.shape == (N,)
    compute_dtype = jnp.dtype(compute_dtype)

    tm, tn, tk = _choose_tiles(M, K, N, compute_dtype)
    M_pad = _round_up(M, tm)
    K_pad = _round_up(K, tk)
    N_pad = _round_up(N, tn)

    # Wrapper-side relayout of the weight (pre-squared, pre-transposed,
    # pre-cast) and bias row. This is the hoistable one-time step.
    w_sq_t, b_row = prepare_weight_sq(
        weight, bias, tk=tk, tn=tn, compute_dtype=compute_dtype)

    # Cast x once here (it is re-streamed N_pad/tn times inside the kernel).
    x_p = jnp.pad(x.astype(jnp.float32),
                  ((0, M_pad - M), (0, K_pad - K))).astype(compute_dtype)

    grid = (M_pad // tm, N_pad // tn, K_pad // tk)

    # VMEM footprint: double-buffered x/w/out tiles + bias row (+ headroom).
    cd = compute_dtype.itemsize
    vmem_est = 2 * (tm * tk * cd + tk * tn * cd + tm * tn * 4) + 2 * tn * 4
    vmem_limit = min(48 << 20, max(vmem_est + (4 << 20), 16 << 20))

    cost = pl.CostEstimate(
        flops=2 * M_pad * N_pad * K_pad,
        transcendentals=0,
        bytes_accessed=(M_pad * K_pad * cd * (N_pad // tn)
                        + K_pad * N_pad * cd * (M_pad // tm)
                        + M_pad * N_pad * 4),
    )

    out = pl.pallas_call(
        _linear_sq_kernel,
        out_shape=jax.ShapeDtypeStruct((M_pad, N_pad), jnp.float32),
        grid=grid,
        in_specs=[
            pl.BlockSpec((tm, tk), lambda i, j, k: (i, k)),   # x tile
            pl.BlockSpec((tk, tn), lambda i, j, k: (k, j)),   # squared-W (K,N) tile
            pl.BlockSpec((1, tn), lambda i, j, k: (0, j)),    # bias row tile
        ],
        out_specs=pl.BlockSpec((tm, tn), lambda i, j, k: (i, j)),
        compiler_params=pltpu.CompilerParams(
            dimension_semantics=("parallel", "parallel", "arbitrary"),
            vmem_limit_bytes=vmem_limit,
        ),
        cost_estimate=cost,
    )(x_p, w_sq_t, b_row)

    return out[:M, :N]


def init_params(key, in_features, out_features):
    """Deterministic init mirroring the PyTorch reset_parameters()."""
    kw, kb = jax.random.split(key)
    # kaiming_uniform_ with a=sqrt(5) on shape (out, in):
    #   bound = gain * sqrt(3 / fan_in), gain = sqrt(2 / (1 + a^2))
    fan_in = in_features
    gain = math.sqrt(2.0 / (1.0 + 5.0))
    w_bound = gain * math.sqrt(3.0 / fan_in)
    weight = jax.random.uniform(
        kw, (out_features, in_features), jnp.float32, -w_bound, w_bound)
    b_bound = 1.0 / math.sqrt(fan_in)
    bias = jax.random.uniform(kb, (out_features,), jnp.float32, -b_bound, b_bound)
    return weight, bias


if __name__ == "__main__":
    key = jax.random.PRNGKey(0)
    k_x, k_p = jax.random.split(key)

    batch = 8
    in_features = 32
    out_features = 16

    x = jax.random.normal(k_x, (batch, in_features), jnp.float32)
    weight, bias = init_params(k_p, in_features, out_features)

    # Default bf16-operand path (v6e/v7x MXU peak, f32 accumulation).
    out_bf16 = jax.block_until_ready(linear_sq_sample(x, weight, bias))
    # f32-operand path (tight numerics).
    out_f32 = jax.block_until_ready(
        linear_sq_sample(x, weight, bias, compute_dtype=jnp.float32))

    assert out_bf16.shape == (batch, out_features)
    assert out_f32.shape == (batch, out_features)

    # References (same math as F.linear(input, W**2, b)).
    w_sq = weight.astype(jnp.float32) ** 2
    ref_f32 = jnp.dot(x, w_sq.T, precision=jax.lax.Precision.HIGHEST) + bias
    assert jnp.allclose(out_f32, ref_f32, atol=1e-4, rtol=1e-4)

    # bf16-matched reference: identical operand rounding, f32 accumulation.
    x_r = x.astype(jnp.bfloat16).astype(jnp.float32)
    w_r = w_sq.T.astype(jnp.bfloat16).astype(jnp.float32)
    ref_bf16 = jnp.dot(x_r, w_r, precision=jax.lax.Precision.HIGHEST) + bias
    assert jnp.allclose(out_bf16, ref_bf16, atol=1e-4, rtol=1e-4)
    # Sanity: bf16 result is close to the exact f32 math (operand rounding only).
    assert jnp.allclose(out_bf16, ref_f32, atol=5e-2, rtol=5e-2)

    print("KERNEL_OK")
</pallas_src>

<mosaic_0001>
module attributes {stable_mosaic.version = 11 : i64} {
  func.func @_linear_sq_kernel(%arg0: i32, %arg1: i32, %arg2: i32, %arg3: memref<8x128xbf16, #tpu.memory_space<vmem>>, %arg4: memref<128x128xbf16, #tpu.memory_space<vmem>>, %arg5: memref<1x128xf32, #tpu.memory_space<vmem>>, %arg6: memref<8x128xf32, #tpu.memory_space<vmem>>) attributes {dimension_semantics = [#tpu.dimension_semantics<parallel>, #tpu.dimension_semantics<parallel>, #tpu.dimension_semantics<arbitrary>], iteration_bounds = array<i64: 1, 1, 1>, scalar_prefetch = 0 : i64, scratch_operands = 0 : i64, tpu.core_type = #tpu.core_type<tc>, window_params = [{transform_indices = @transform_0, window_bounds = array<i64: 8, 128>}, {transform_indices = @transform_1, window_bounds = array<i64: 128, 128>}, {transform_indices = @transform_2, window_bounds = array<i64: 1, 128>}, {transform_indices = @transform_3, window_bounds = array<i64: 8, 128>}]} {
    %c0_i32 = arith.constant 0 : i32
    %0 = arith.cmpi eq, %arg2, %c0_i32 : i32
    %1 = arith.extui %0 : i1 to i32
    %c0_i32_0 = arith.constant 0 : i32
    %2 = arith.cmpi ne, %1, %c0_i32_0 : i32
    scf.if %2 {
      %c0_8 = arith.constant 0 : index
      %c0_9 = arith.constant 0 : index
      %9 = vector.load %arg5[%c0_8, %c0_9] : memref<1x128xf32, #tpu.memory_space<vmem>>, vector<1x128xf32>
      %10 = vector.shape_cast %9 : vector<1x128xf32> to vector<1x128xf32>
      %11 = vector.broadcast %10 : vector<1x128xf32> to vector<8x128xf32>
      %c0_10 = arith.constant 0 : index
      %c0_11 = arith.constant 0 : index
      %12 = vector.load %arg6[%c0_10, %c0_11] : memref<8x128xf32, #tpu.memory_space<vmem>>, vector<8x128xf32>
      tpu.vector_store %arg6[%c0_10, %c0_11], %11 {strides = array<i32>} : memref<8x128xf32, #tpu.memory_space<vmem>>, vector<8x128xf32>,
    } else {
    }
    %c0 = arith.constant 0 : index
    %c0_1 = arith.constant 0 : index
    %3 = vector.load %arg6[%c0, %c0_1] : memref<8x128xf32, #tpu.memory_space<vmem>>, vector<8x128xf32>
    %c0_2 = arith.constant 0 : index
    %c0_3 = arith.constant 0 : index
    %4 = vector.load %arg3[%c0_2, %c0_3] : memref<8x128xbf16, #tpu.memory_space<vmem>>, vector<8x128xbf16>
    %c0_4 = arith.constant 0 : index
    %c0_5 = arith.constant 0 : index
    %5 = vector.load %arg4[%c0_4, %c0_5] : memref<128x128xbf16, #tpu.memory_space<vmem>>, vector<128x128xbf16>
    %cst = arith.constant dense<0.000000e+00> : vector<8x128xf32>
    %6 = tpu.matmul %4, %5, %cst {dimension_numbers = #tpu.dot_dimension_numbers<[1], [0], [0], [1], [0, 0, 1, 1], [], []>} : vector<8x128xbf16>, vector<128x128xbf16>, vector<8x128xf32> -> vector<8x128xf32>
    %7 = arith.addf %3, %6 : vector<8x128xf32>
    %c0_6 = arith.constant 0 : index
    %c0_7 = arith.constant 0 : index
    %8 = vector.load %arg6[%c0_6, %c0_7] : memref<8x128xf32, #tpu.memory_space<vmem>>, vector<8x128xf32>
    tpu.vector_store %arg6[%c0_6, %c0_7], %7 {strides = array<i32>} : memref<8x128xf32, #tpu.memory_space<vmem>>, vector<8x128xf32>,
    return
  }
  func.func @transform_0(%arg0: i32, %arg1: i32, %arg2: i32) -> (i32, i32) {
    %c0_i32 = arith.constant 0 : i32
    return %arg0, %arg2 : i32, i32
  }
  func.func @transform_1(%arg0: i32, %arg1: i32, %arg2: i32) -> (i32, i32) {
    %c0_i32 = arith.constant 0 : i32
    return %arg2, %arg1 : i32, i32
  }
  func.func @transform_2(%arg0: i32, %arg1: i32, %arg2: i32) -> (i32, i32) {
    %c0_i32 = arith.constant 0 : i32
    %c0_i32_0 = arith.constant 0 : i32
    return %c0_i32, %arg1 : i32, i32
  }
  func.func @transform_3(%arg0: i32, %arg1: i32, %arg2: i32) -> (i32, i32) {
    %c0_i32 = arith.constant 0 : i32
    return %arg0, %arg1 : i32, i32
  }
}

</mosaic_0001>

<llo_original>
// kernel: tpu_custom_call.1
$region0: #{tpu_custom_call.1}
  #allocation0 [shape = 'u32[]', space=smem, size = 0x4, offset = 0x4, fixed_abs, tag = 'smem constant byte address 0x4 - core index']
  #allocation1 [shape = 'u32[144,128]{1,0:T(1,128)}', space=vmem, size = 0x12000, scoped, tag = 'internal scratch']
  %s0 = inlined_call_operand.hbm [shape: bf16[8,128], index: 0, kind: input, shape index: {}]
  %s1 = inlined_call_operand.hbm [shape: bf16[128,128], index: 1, kind: input, shape index: {}]
  %s2 = inlined_call_operand.vmem [shape: f32[1,128], index: 2, kind: input, shape index: {}]
  %s3 = inlined_call_operand.hbm [shape: f32[8,128], index: 3, kind: output, shape index: {}]
  %s4 = sld [smem:[#allocation0]]
  $region34: #{tpu_custom_call.1} parent=0
    _
  %s6 = ssub.s32 1, %s4
  %s7 = scalar_select 0, %s6, %s4
  $region1: #{tpu_custom_call.1} parent=0
    #allocation2 [shape = 'u8[2048]{0}', space=vmem, size = 0x800, scoped, tag = 'input window, operand 0, single buffered']
    #allocation3 [shape = 's32[1]{0}', space=sflag, size = 0x4, scoped, tag = 'scoped memory for tpu_custom_call.1']
    #allocation4 [shape = 's32[1]{0}', space=sflag, size = 0x4, scoped, tag = 'scoped memory for tpu_custom_call.1']
    #allocation5 [shape = 'u8[32768]{0}', space=vmem, size = 0x8000, scoped, tag = 'input window, operand 1, single buffered']
    #allocation6 [shape = 's32[1]{0}', space=sflag, size = 0x4, scoped, tag = 'scoped memory for tpu_custom_call.1']
    #allocation7 [shape = 'u8[4096]{0}', space=vmem, size = 0x1000, scoped, tag = 'output window, operand 0, single buffered']
    %8 = vsyncpa [#allocation3], 0
    %9 = vsyncpa [#allocation6], 0
    %10 = vsyncpa [#allocation4], 0
    // Predicated region
    $region2: #{tpu_custom_call.1} parent=1 // pred_check
      _
    $region3: #{tpu_custom_call.1} parent=1 // pred_check_branch
      %12 = sbr.rel (0) target = $region5
    $region4: #{tpu_custom_call.1} parent=1 // pred_region
      %s14 = ssub.s32 64, 64
      %15 = vsyncadd [#allocation3], %s14
      %s17 = sshll.u32 [#allocation2], 4
      %s18 = int_to_ptr.vmem [resolvable:$true] %s17
      %20 = dma.hbm_to_vmem [thread:$0]  %s0, 64, %s18, [#allocation3]
    $region5: #{tpu_custom_call.1} parent=1 // pred_fallthru
      _
    // Predicated region
    $region6: #{tpu_custom_call.1} parent=1 // pred_check
      _
    $region7: #{tpu_custom_call.1} parent=1 // pred_check_branch
      %22 = sbr.rel (0) target = $region9
    $region8: #{tpu_custom_call.1} parent=1 // pred_region
      %s24 = ssub.s32 1024, 1024
      %25 = vsyncadd [#allocation6], %s24
      %s26 = sshll.u32 [#allocation5], 4
      %s27 = int_to_ptr.vmem [resolvable:$true] %s26
      %32 = dma.hbm_to_vmem [thread:$0]  %s1, 1024, %s27, [#allocation6], 64, 64, 4
    $region9: #{tpu_custom_call.1} parent=1 // pred_fallthru
      _
    // Predicated region
    $region10: #{tpu_custom_call.1} parent=1 // pred_check
      _
    $region11: #{tpu_custom_call.1} parent=1 // pred_check_branch
      %34 = sbr.rel (0) target = $region13
    $region12: #{tpu_custom_call.1} parent=1 // pred_region
      _
    $region13: #{tpu_custom_call.1} parent=1 // pred_fallthru
      _
    // Predicated region
    $region14: #{tpu_custom_call.1} parent=1 // pred_check
      _
    $region15: #{tpu_custom_call.1} parent=1 // pred_check_branch
      %36 = sbr.rel (0) target = $region17
    $region16: #{tpu_custom_call.1} parent=1 // pred_region
      %37 = dma.done [#allocation3], 64
    $region17: #{tpu_custom_call.1} parent=1 // pred_fallthru
      _
    // Predicated region
    $region18: #{tpu_custom_call.1} parent=1 // pred_check
      _
    $region19: #{tpu_custom_call.1} parent=1 // pred_check_branch
      %39 = sbr.rel (0) target = $region21
    $region20: #{tpu_custom_call.1} parent=1 // pred_region
      %40 = dma.done [#allocation6], 1024
    $region21: #{tpu_custom_call.1} parent=1 // pred_fallthru
      _
    %p42 = scmp.eq.s32.totalorder 0, 0
    // Predicated region
    $region22: #{tpu_custom_call.1} parent=1 // pred_check
      %p43 = pneg %p42
    $region23: #{tpu_custom_call.1} parent=1 // pred_check_branch
      %45 = sbr.rel (%p43) target = $region25
    $region24: #{tpu_custom_call.1} parent=1 // pred_region
      %v46 = vld [vmem:[%s2] sm:$0x1]
      %v48 = vlaneseq
      %v49 = vshrl.u32 %v48, 7
      %v50 = vsub.s32 0, %v49
      %v51 = vrot.slane %v46, %v50
      %53 = vst [vmem:[#allocation7] sm:$0xff] %v51
    $region25: #{tpu_custom_call.1} parent=1 // pred_fallthru
      _
    %v54 = vld [vmem:[#allocation7] sm:$0xff]
    %v55 = vld [vmem:[#allocation2] sm:$0xf]
    %v56 = vld [vmem:[#allocation5] sm:$0xf]
    %v57 = vld [vmem:[#allocation5 + $0x4] sm:$0xf]
    %v58 = vld [vmem:[#allocation5 + $0x8] sm:$0xf]
    %v59 = vld [vmem:[#allocation5 + $0xc] sm:$0xf]
    %v60 = vld [vmem:[#allocation5 + $0x10] sm:$0xf]
    %v61 = vld [vmem:[#allocation5 + $0x14] sm:$0xf]
    %v62 = vld [vmem:[#allocation5 + $0x18] sm:$0xf]
    %v63 = vld [vmem:[#allocation5 + $0x1c] sm:$0xf]
    %v64 = vld [vmem:[#allocation5 + $0x20] sm:$0xf]
    %v65 = vld [vmem:[#allocation5 + $0x24] sm:$0xf]
    %v66 = vld [vmem:[#allocation5 + $0x28] sm:$0xf]
    %v67 = vld [vmem:[#allocation5 + $0x2c] sm:$0xf]
    %v68 = vld [vmem:[#allocation5 + $0x30] sm:$0xf]
    %v69 = vld [vmem:[#allocation5 + $0x34] sm:$0xf]
    %v70 = vld [vmem:[#allocation5 + $0x38] sm:$0xf]
    %v71 = vld [vmem:[#allocation5 + $0x3c] sm:$0xf]
    %v88 = vunpack.c.l.b16 %v56
    %v89 = vunpack.c.l.b16 %v57
    %v90 = vunpack.c.l.b16 %v58
    %v91 = vunpack.c.l.b16 %v59
    %v92 = vunpack.c.l.b16 %v60
    %v93 = vunpack.c.l.b16 %v61
    %v94 = vunpack.c.l.b16 %v62
    %v95 = vunpack.c.l.b16 %v63
    %v96 = vunpack.c.l.b16 %v64
    %v97 = vunpack.c.l.b16 %v65
    %v98 = vunpack.c.l.b16 %v66
    %v99 = vunpack.c.l.b16 %v67
    %v100 = vunpack.c.l.b16 %v68
    %v101 = vunpack.c.l.b16 %v69
    %v102 = vunpack.c.l.b16 %v70
    %v103 = vunpack.c.l.b16 %v71
    %v104 = vpack.c.b16 %v89, %v88
    %v105 = vpack.c.b16 %v91, %v90
    %v106 = vpack.c.b16 %v93, %v92
    %v107 = vpack.c.b16 %v95, %v94
    %v108 = vpack.c.b16 %v97, %v96
    %v109 = vpack.c.b16 %v99, %v98
    %v110 = vpack.c.b16 %v101, %v100
    %v111 = vpack.c.b16 %v103, %v102
    %120 = vmatprep.subr.bf16.mxu0 0
    %121 = vmatpush1.bf16.msra.mxu0 %v111
    %122 = vmatprep.subr.bf16.mxu0 0
    %123 = vmatpush1.bf16.msra.mxu0 %v110
    %124 = vmatprep.subr.bf16.mxu0 0
    %125 = vmatpush1.bf16.msra.mxu0 %v109
    %126 = vmatprep.subr.bf16.mxu0 0
    %127 = vmatpush1.bf16.msra.mxu0 %v108
    %128 = vmatprep.subr.bf16.mxu0 0
    %129 = vmatpush1.bf16.msra.mxu0 %v107
    %130 = vmatprep.subr.bf16.mxu0 0
    %131 = vmatpush1.bf16.msra.mxu0 %v106
    %132 = vmatprep.subr.bf16.mxu0 0
    %133 = vmatpush1.bf16.msra.mxu0 %v105
    %134 = vmatprep.subr.bf16.mxu0 0
    %135 = vmatpush1.bf16.msra.mxu0 %v104
    %136 = vmatprep.subr.bf16.mxu0 0
    %137 = vmatpush2.bf16.msra.mxu0 0
    %138 = vmatprep.subr.bf16.mxu0 0
    %139 = vmatpush2.bf16.msra.mxu0 0
    %140 = vmatprep.subr.bf16.mxu0 0
    %141 = vmatpush2.bf16.msra.mxu0 0
    %142 = vmatprep.subr.bf16.mxu0 0
    %143 = vmatpush2.bf16.msra.mxu0 0
    %144 = vmatprep.subr.bf16.mxu0 0
    %145 = vmatpush2.bf16.msra.mxu0 0
    %146 = vmatprep.subr.bf16.mxu0 0
    %147 = vmatpush2.bf16.msra.mxu0 0
    %148 = vmatprep.subr.bf16.mxu0 0
    %149 = vmatpush2.bf16.msra.mxu0 0
    %150 = vmatprep.subr.bf16.mxu0 0
    %151 = vmatpush2.bf16.msra.mxu0 0
    %152 = vmatprep.mubr.bf16.mxu0 0
    %153 = vmatmul.mubr.bf16.gmra.mxu0 %v55
    %v154 = vpop.f32.mrf.mxu0
    %v155 = vadd.f32 0.0, %v154
    %v156 = vpop.f32.mrf.mxu0
    %v157 = vpop.f32.mrf.mxu0
    %v158 = vpop.f32.mrf.mxu0
    %159 = vdwg.mxu0
    %v160 = vadd.f32 %v54, %v155
    %161 = vst [vmem:[#allocation7] sm:$0xff] %v160
    // Predicated region
    $region26: #{tpu_custom_call.1} parent=1 // pred_check
      _
    $region27: #{tpu_custom_call.1} parent=1 // pred_check_branch
      %163 = sbr.rel (0) target = $region29
    $region28: #{tpu_custom_call.1} parent=1 // pred_region
      %s165 = ssub.s32 128, 128
      %166 = vsyncadd [#allocation4], %s165
      %s168 = sshll.u32 [#allocation7], 4
      %s169 = int_to_ptr.vmem [resolvable:$true] %s168
      %171 = dma.vmem_to_hbm [thread:$0]  %s169, 128, %s3, [#allocation4]
    $region29: #{tpu_custom_call.1} parent=1 // pred_fallthru
      _
    // Predicated region
    $region30: #{tpu_custom_call.1} parent=1 // pred_check
      _
    $region31: #{tpu_custom_call.1} parent=1 // pred_check_branch
      %173 = sbr.rel (0) target = $region33
    $region32: #{tpu_custom_call.1} parent=1 // pred_region
      %174 = dma.done [#allocation4], 128
    $region33: #{tpu_custom_call.1} parent=1 // pred_fallthru
      _
    %175 = vsyncpa [#allocation3], 1
    %176 = vsyncpa [#allocation6], 1
    %177 = vsyncpa [#allocation4], 1

</llo_original>
